<compile_context>
chip_gen: v5e
topology: v5e:2x2
jax: 0.10.0
libtpu: 0.0.40
codegen_flags: <defaults>
</compile_context>

<pallas_src>
import jax
import jax.numpy as jnp
from jax.experimental import pallas as pl
from jax.experimental.pallas import tpu as pltpu


ALPHA = 1.0
GAMMA = 2.0   # fixed at 2: kernel uses an explicit square instead of pow


def _round_up(x, m):
    return ((x + m - 1) // m) * m


def _vmem_limit_bytes():
    """Scoped-VMEM limit to request, derived from the chip generation."""
    cap = 64 * 1024 * 1024            # conservative default: v7x physical VMEM
    try:
        info = pltpu.get_tpu_info()
        cap = int(getattr(info, "vmem_capacity_bytes", cap))
    except Exception:
        pass
    # v5e/v6e (128 MiB physical) -> 96 MiB scoped; v7x (64 MiB) -> 48 MiB.
    return min((cap * 3) // 4, 96 * 1024 * 1024)


def _sublane_multiple(dtype):
    itemsize = jnp.dtype(dtype).itemsize
    return max(8, 32 // itemsize)     # 8 for f32, 16 for bf16, 32 for int8/fp8


def _choose_tile_n(n, c, logits_dtype, vmem_limit):
    """Pick the row tile so the *physical* double-buffered VMEM plan fits."""
    itemsize = jnp.dtype(logits_dtype).itemsize
    c_pad = _round_up(c, 128)         # lane padding of the (tile, C) block
    per_row_bytes = (
        2 * c_pad * itemsize          # double-buffered logits tile
        + 3 * c_pad * 4               # f32 upcast + exp/where temporaries
        + 2 * 128 * 4                 # double-buffered (tile, 1) i32 targets (128-lane padded)
    )
    budget = max(256 * 1024, (vmem_limit * 2) // 3)   # leave headroom under the limit
    t = budget // per_row_bytes
    sub = _sublane_multiple(logits_dtype)
    t = max(sub, (t // sub) * sub)
    return min(t, _round_up(n, sub))


def _focal_per_row(x, t):
    """x: (tile_n, C) f32 logits, t: (tile_n, 1) i32 targets -> (tile_n, 1) f32."""
    # cross entropy per sample: logsumexp(x) - x[target]
    m = jnp.max(x, axis=-1, keepdims=True)
    lse = m + jnp.log(jnp.sum(jnp.exp(x - m), axis=-1, keepdims=True))
    col = jax.lax.broadcasted_iota(jnp.int32, x.shape, 1)
    tgt = jnp.sum(jnp.where(col == t, x, 0.0), axis=-1, keepdims=True)
    ce = lse - tgt
    # focal weighting (gamma == 2 -> explicit square, stays on the VPU)
    pt = jnp.exp(-ce)
    om = 1.0 - pt
    return ALPHA * (om * om) * ce


def _make_sum_kernel(n_valid, tile_n, steps_per_part):
    """Accumulates sum(F_loss) into a per-partition (1,1,1) resident block."""
    def kernel(logits_ref, targets_ref, out_ref):
        p = pl.program_id(0)
        i = pl.program_id(1)

        @pl.when(i == 0)
        def _init():
            out_ref[...] = jnp.zeros_like(out_ref)

        x = logits_ref[...].astype(jnp.float32)       # (tile_n, C)
        t = targets_ref[...]                          # (tile_n, 1) int32
        f = _focal_per_row(x, t)                      # (tile_n, 1)

        # Mask rows beyond the true N: covers both the overhanging edge block
        # and clamped/duplicated blocks from the partitioned grid.
        linear_tile = p * steps_per_part + i
        row = jax.lax.broadcasted_iota(jnp.int32, (tile_n, 1), 0)
        valid = (linear_tile * tile_n + row) < n_valid
        f = jnp.where(valid, f, 0.0)

        out_ref[...] += jnp.sum(f)

    return kernel


def _none_kernel(logits_ref, targets_ref, out_ref):
    x = logits_ref[...].astype(jnp.float32)
    out_ref[...] = _focal_per_row(x, targets_ref[...])


def focal_loss(logits, targets, reduction="mean", *, tile_n=None):
    """logits: (N, C) float (f32 or bf16); targets: (N,) integer class indices."""
    n, c = logits.shape
    vmem_limit = _vmem_limit_bytes()
    sub = _sublane_multiple(logits.dtype)
    if tile_n is None:
        tile_n = _choose_tile_n(n, c, logits.dtype, vmem_limit)
    else:
        tile_n = max(sub, (int(tile_n) // sub) * sub)
        tile_n = min(tile_n, _round_up(n, sub))

    num_tiles = pl.cdiv(n, tile_n)
    targets2d = targets.astype(jnp.int32).reshape(n, 1)

    if reduction in ("mean", "sum"):
        # Shard the reduction over (up to) 2 partitions so v7x's two
        # TensorCores split the grid; no-op cost on single-TC v5e/v6e.
        num_parts = 2 if num_tiles >= 2 else 1
        steps = pl.cdiv(num_tiles, num_parts)
        last_tile = num_tiles - 1

        def in_map(p, i):
            # Clamp so no block start is fully out of bounds; clamped
            # (duplicate) blocks are zeroed by the in-kernel validity mask.
            return (jnp.minimum(p * steps + i, last_tile), 0)

        partials = pl.pallas_call(
            _make_sum_kernel(n, tile_n, steps),
            out_shape=jax.ShapeDtypeStruct((num_parts, 1, 1), jnp.float32),
            grid=(num_parts, steps),
            in_specs=[
                pl.BlockSpec((tile_n, c), in_map),
                pl.BlockSpec((tile_n, 1), in_map),
            ],
            # One resident accumulator block per partition.
            out_specs=pl.BlockSpec((1, 1, 1), lambda p, i: (p, 0, 0)),
            compiler_params=pltpu.CompilerParams(
                dimension_semantics=("parallel", "arbitrary"),
                vmem_limit_bytes=vmem_limit),
        )(logits, targets2d)

        total = jnp.sum(partials)
        if reduction == "mean":
            return total / jnp.float32(n)
        return total

    # reduction == 'none': independent tiles, no cross-step state.
    # Overhanging edge-block stores (rows >= N) are dropped by Pallas.
    per_sample = pl.pallas_call(
        _none_kernel,
        out_shape=jax.ShapeDtypeStruct((n, 1), jnp.float32),
        grid=(num_tiles,),
        in_specs=[
            pl.BlockSpec((tile_n, c), lambda i: (i, 0)),
            pl.BlockSpec((tile_n, 1), lambda i: (i, 0)),
        ],
        out_specs=pl.BlockSpec((tile_n, 1), lambda i: (i, 0)),
        compiler_params=pltpu.CompilerParams(
            dimension_semantics=("parallel",),
            vmem_limit_bytes=vmem_limit),
    )(logits, targets2d)
    return per_sample[:, 0]


def focal_loss_ref(logits, targets, reduction="mean"):
    """Pure-JAX reference for validation."""
    x = logits.astype(jnp.float32)
    lse = jax.scipy.special.logsumexp(x, axis=-1)
    tgt = jnp.take_along_axis(x, targets[:, None].astype(jnp.int32),
                              axis=-1)[:, 0]
    ce = lse - tgt
    pt = jnp.exp(-ce)
    fl = ALPHA * (1.0 - pt) ** GAMMA * ce
    if reduction == "mean":
        return jnp.mean(fl)
    if reduction == "sum":
        return jnp.sum(fl)
    return fl


if __name__ == "__main__":
    key = jax.random.PRNGKey(0)
    k1, k2, k3, k4, k5, k6 = jax.random.split(key, 6)

    # Case 1: small batch, default 'mean' (single tile, single partition).
    N, C = 16, 8
    logits = jax.random.normal(k1, (N, C), dtype=jnp.float32)
    targets = jax.random.randint(k2, (N,), 0, C, dtype=jnp.int32)

    out = jax.block_until_ready(focal_loss(logits, targets, reduction="mean"))
    ref = focal_loss_ref(logits, targets, reduction="mean")
    assert jnp.allclose(out, ref, rtol=1e-5, atol=1e-5), (out, ref)

    # Case 2: N not a multiple of the tile, forced small tile -> multi-step
    # 2-partition grid, clamped edge blocks, padded-row masking; also check
    # 'sum' and 'none'.
    N2, C2 = 37, 8
    logits2 = jax.random.normal(k3, (N2, C2), dtype=jnp.float32)
    targets2 = jax.random.randint(k4, (N2,), 0, C2, dtype=jnp.int32)

    out_mean = jax.block_until_ready(
        focal_loss(logits2, targets2, reduction="mean", tile_n=8))
    out_sum = jax.block_until_ready(
        focal_loss(logits2, targets2, reduction="sum", tile_n=8))
    out_none = jax.block_until_ready(
        focal_loss(logits2, targets2, reduction="none", tile_n=8))

    assert jnp.allclose(out_mean, focal_loss_ref(logits2, targets2, "mean"),
                        rtol=1e-5, atol=1e-5)
    assert jnp.allclose(out_sum, focal_loss_ref(logits2, targets2, "sum"),
                        rtol=1e-5, atol=1e-5)
    assert jnp.allclose(out_none, focal_loss_ref(logits2, targets2, "none"),
                        rtol=1e-5, atol=1e-5)

    # Case 3: bf16 logits (HBM-traffic-halving path), auto tile, non-multiple N.
    N3, C3 = 300, 16
    logits3 = jax.random.normal(k5, (N3, C3), dtype=jnp.bfloat16)
    targets3 = jax.random.randint(k6, (N3,), 0, C3, dtype=jnp.int32)

    out_bf16 = jax.block_until_ready(
        focal_loss(logits3, targets3, reduction="mean"))
    ref_bf16 = focal_loss_ref(logits3, targets3, reduction="mean")
    assert jnp.allclose(out_bf16, ref_bf16, rtol=1e-4, atol=1e-5), (
        out_bf16, ref_bf16)

    print("KERNEL_OK")
</pallas_src>

<mosaic_0001>
module attributes {stable_mosaic.version = 11 : i64} {
  func.func @kernel(%arg0: i32, %arg1: i32, %arg2: memref<16x8xf32, #tpu.memory_space<vmem>>, %arg3: memref<16x1xi32, #tpu.memory_space<vmem>>, %arg4: memref<1x1x1xf32, #tpu.memory_space<vmem>>) attributes {dimension_semantics = [#tpu.dimension_semantics<parallel>, #tpu.dimension_semantics<arbitrary>], iteration_bounds = array<i64: 1, 1>, scalar_prefetch = 0 : i64, scratch_operands = 0 : i64, tpu.core_type = #tpu.core_type<tc>, window_params = [{transform_indices = @transform_0, window_bounds = array<i64: 16, 8>}, {transform_indices = @transform_1, window_bounds = array<i64: 16, 1>}, {transform_indices = @transform_2, window_bounds = array<i64: 1, 1, 1>}]} {
    %c0_i32 = arith.constant 0 : i32
    %0 = arith.cmpi eq, %arg1, %c0_i32 : i32
    %1 = arith.extui %0 : i1 to i32
    %c0_i32_0 = arith.constant 0 : i32
    %2 = arith.cmpi ne, %1, %c0_i32_0 : i32
    scf.if %2 {
      %cst_19 = arith.constant 0.000000e+00 : f32
      %49 = vector.broadcast %cst_19 : f32 to vector<1x1x1xf32>
      %c0_20 = arith.constant 0 : index
      %c0_21 = arith.constant 0 : index
      %c0_22 = arith.constant 0 : index
      %50 = vector.load %arg4[%c0_20, %c0_21, %c0_22] : memref<1x1x1xf32, #tpu.memory_space<vmem>>, vector<1x1x1xf32>
      tpu.vector_store %arg4[%c0_20, %c0_21, %c0_22], %49 {strides = array<i32>} : memref<1x1x1xf32, #tpu.memory_space<vmem>>, vector<1x1x1xf32>,
    } else {
    }
    %c0 = arith.constant 0 : index
    %c0_1 = arith.constant 0 : index
    %3 = vector.load %arg2[%c0, %c0_1] : memref<16x8xf32, #tpu.memory_space<vmem>>, vector<16x8xf32>
    %c0_2 = arith.constant 0 : index
    %c0_3 = arith.constant 0 : index
    %4 = vector.load %arg3[%c0_2, %c0_3] : memref<16x1xi32, #tpu.memory_space<vmem>>, vector<16x1xi32>
    %cst = arith.constant dense<0xFF800000> : vector<16xf32>
    %5 = vector.multi_reduction <maximumf>, %3, %cst [1] : vector<16x8xf32> to vector<16xf32>
    %6 = vector.shape_cast %5 : vector<16xf32> to vector<16x1xf32>
    %7 = vector.broadcast %6 : vector<16x1xf32> to vector<16x8xf32>
    %8 = arith.subf %3, %7 : vector<16x8xf32>
    %9 = math.exp %8 : vector<16x8xf32>
    %cst_4 = arith.constant dense<0.000000e+00> : vector<16xf32>
    %10 = vector.multi_reduction <add>, %9, %cst_4 [1] : vector<16x8xf32> to vector<16xf32>
    %11 = vector.shape_cast %10 : vector<16xf32> to vector<16x1xf32>
    %12 = math.log %11 : vector<16x1xf32>
    %13 = arith.addf %6, %12 : vector<16x1xf32>
    %14 = tpu.iota {dimensions = array<i32: 1>} : vector<16x8xi32>
    %15 = vector.broadcast %4 : vector<16x1xi32> to vector<16x8xi32>
    %16 = arith.cmpi eq, %14, %15 : vector<16x8xi32>
    %cst_5 = arith.constant 0.000000e+00 : f32
    %17 = vector.broadcast %cst_5 : f32 to vector<16x8xf32>
    %18 = arith.select %16, %3, %17 : vector<16x8xi1>, vector<16x8xf32>
    %cst_6 = arith.constant dense<0.000000e+00> : vector<16xf32>
    %19 = vector.multi_reduction <add>, %18, %cst_6 [1] : vector<16x8xf32> to vector<16xf32>
    %20 = vector.shape_cast %19 : vector<16xf32> to vector<16x1xf32>
    %21 = arith.subf %13, %20 : vector<16x1xf32>
    %cst_7 = arith.constant 0.000000e+00 : f32
    %22 = vector.broadcast %cst_7 : f32 to vector<16x1xf32>
    %23 = arith.subf %22, %21 : vector<16x1xf32>
    %24 = math.exp %23 : vector<16x1xf32>
    %cst_8 = arith.constant 1.000000e+00 : f32
    %25 = vector.broadcast %cst_8 : f32 to vector<16x1xf32>
    %26 = arith.subf %25, %24 : vector<16x1xf32>
    %27 = arith.mulf %26, %26 : vector<16x1xf32>
    %cst_9 = arith.constant 1.000000e+00 : f32
    %28 = vector.broadcast %cst_9 : f32 to vector<16x1xf32>
    %29 = arith.mulf %28, %27 : vector<16x1xf32>
    %30 = arith.mulf %29, %21 : vector<16x1xf32>
    %c1_i32 = arith.constant 1 : i32
    %31 = arith.muli %arg0, %c1_i32 : i32
    %32 = arith.addi %31, %arg1 : i32
    %33 = tpu.iota {dimensions = array<i32: 0>} : vector<16x1xi32>
    %c16_i32 = arith.constant 16 : i32
    %34 = arith.muli %32, %c16_i32 : i32
    %35 = vector.broadcast %34 : i32 to vector<16x1xi32>
    %36 = arith.addi %35, %33 : vector<16x1xi32>
    %c16_i32_10 = arith.constant 16 : i32
    %37 = vector.broadcast %c16_i32_10 : i32 to vector<16x1xi32>
    %38 = arith.cmpi slt, %36, %37 : vector<16x1xi32>
    %cst_11 = arith.constant 0.000000e+00 : f32
    %39 = vector.broadcast %cst_11 : f32 to vector<16x1xf32>
    %40 = arith.select %38, %30, %39 : vector<16x1xi1>, vector<16x1xf32>
    %c0_12 = arith.constant 0 : index
    %c0_13 = arith.constant 0 : index
    %c0_14 = arith.constant 0 : index
    %41 = vector.load %arg4[%c0_12, %c0_13, %c0_14] : memref<1x1x1xf32, #tpu.memory_space<vmem>>, vector<1x1x1xf32>
    %42 = vector.shape_cast %40 : vector<16x1xf32> to vector<1x16x1xf32>
    %cst_15 = arith.constant dense<0.000000e+00> : vector<1xf32>
    %43 = vector.multi_reduction <add>, %42, %cst_15 [1, 2] : vector<1x16x1xf32> to vector<1xf32>
    %44 = vector.shape_cast %43 : vector<1xf32> to vector<1x1x1xf32>
    %45 = vector.extract %44[0, 0, 0] : f32 from vector<1x1x1xf32>
    %46 = vector.broadcast %45 : f32 to vector<1x1x1xf32>
    %47 = arith.addf %41, %46 : vector<1x1x1xf32>
    %c0_16 = arith.constant 0 : index
    %c0_17 = arith.constant 0 : index
    %c0_18 = arith.constant 0 : index
    %48 = vector.load %arg4[%c0_16, %c0_17, %c0_18] : memref<1x1x1xf32, #tpu.memory_space<vmem>>, vector<1x1x1xf32>
    tpu.vector_store %arg4[%c0_16, %c0_17, %c0_18], %47 {strides = array<i32>} : memref<1x1x1xf32, #tpu.memory_space<vmem>>, vector<1x1x1xf32>,
    return
  }
  func.func @transform_0(%arg0: i32, %arg1: i32) -> (i32, i32) {
    %c1_i32 = arith.constant 1 : i32
    %0 = arith.muli %arg0, %c1_i32 : i32
    %1 = arith.addi %0, %arg1 : i32
    %c0_i32 = arith.constant 0 : i32
    %2 = arith.minsi %1, %c0_i32 : i32
    %c0_i32_0 = arith.constant 0 : i32
    %c0_i32_1 = arith.constant 0 : i32
    return %2, %c0_i32_0 : i32, i32
  }
  func.func @transform_1(%arg0: i32, %arg1: i32) -> (i32, i32) {
    %c1_i32 = arith.constant 1 : i32
    %0 = arith.muli %arg0, %c1_i32 : i32
    %1 = arith.addi %0, %arg1 : i32
    %c0_i32 = arith.constant 0 : i32
    %2 = arith.minsi %1, %c0_i32 : i32
    %c0_i32_0 = arith.constant 0 : i32
    %c0_i32_1 = arith.constant 0 : i32
    return %2, %c0_i32_0 : i32, i32
  }
  func.func @transform_2(%arg0: i32, %arg1: i32) -> (i32, i32, i32) {
    %c0_i32 = arith.constant 0 : i32
    %c0_i32_0 = arith.constant 0 : i32
    %c0_i32_1 = arith.constant 0 : i32
    return %arg0, %c0_i32, %c0_i32_0 : i32, i32, i32
  }
}

</mosaic_0001>

<llo_original>
// kernel: tpu_custom_call.1
$region0: #{tpu_custom_call.1}
  #allocation0 [shape = 'u32[]', space=smem, size = 0x4, offset = 0x4, fixed_abs, tag = 'smem constant byte address 0x4 - core index']
  #allocation1 [shape = 'u32[72,128]{1,0:T(1,128)}', space=vmem, size = 0x9000, scoped, tag = 'internal scratch']
  %s0 = inlined_call_operand.vmem [shape: f32[16,8], index: 0, kind: input, shape index: {}]
  %s1 = inlined_call_operand.vmem [shape: s32[16,1], index: 1, kind: input, shape index: {}]
  %s2 = inlined_call_operand.hbm [shape: f32[1,1,1], index: 2, kind: output, shape index: {}]
  %s3 = sld [smem:[#allocation0]]
  $region22: #{tpu_custom_call.1} parent=0
    _
  %s5 = ssub.s32 1, %s3
  %s6 = scalar_select 0, %s5, %s3
  $region1: #{tpu_custom_call.1} parent=0
    #allocation2 [shape = 'u8[512]{0}', space=vmem, size = 0x400, scoped, tag = 'output window, operand 0, single buffered']
    #allocation3 [shape = 's32[1]{0}', space=sflag, size = 0x4, scoped, tag = 'scoped memory for tpu_custom_call.1']
    %7 = vsyncpa [#allocation3], 0
    // Predicated region
    $region2: #{tpu_custom_call.1} parent=1 // pred_check
      _
    $region3: #{tpu_custom_call.1} parent=1 // pred_check_branch
      %9 = sbr.rel (0) target = $region5
    $region4: #{tpu_custom_call.1} parent=1 // pred_region
      %s10 = sadd.s32 0, 0
      %p11 = scmp.lt.s32.totalorder %s10, 0
      %s12 = scalar_select %p11, %s10, 0
      %s13 = smul.u32 2, %s12
      %p14 = scmp.lt.s32.totalorder %s13, 1
      %s15 = scalar_select %p14, %s13, 1
      %s16 = smul.addr %s15, 8
      %s17 = scalar_lea.vmem %s0, %s16
      %s18 = sadd.s32 0, 0
      %p19 = scmp.lt.s32.totalorder %s18, 0
      %s20 = scalar_select %p19, %s18, 0
      %s21 = smul.u32 2, %s20
    $region5: #{tpu_custom_call.1} parent=1 // pred_fallthru
      _
    // Predicated region
    $region6: #{tpu_custom_call.1} parent=1 // pred_check
      _
    $region7: #{tpu_custom_call.1} parent=1 // pred_check_branch
      %23 = sbr.rel (0) target = $region9
    $region8: #{tpu_custom_call.1} parent=1 // pred_region
      %s24 = sadd.s32 0, 0
      %p25 = scmp.lt.s32.totalorder %s24, 0
      %s26 = scalar_select %p25, %s24, 0
      %s27 = smul.u32 2, %s26
      %p28 = scmp.lt.s32.totalorder %s27, 1
      %s29 = scalar_select %p28, %s27, 1
      %s30 = smul.addr %s29, 8
      %s31 = scalar_lea.vmem %s1, %s30
      %s32 = sadd.s32 0, 0
      %p33 = scmp.lt.s32.totalorder %s32, 0
      %s34 = scalar_select %p33, %s32, 0
      %s35 = smul.u32 2, %s34
    $region9: #{tpu_custom_call.1} parent=1 // pred_fallthru
      _
    %s36 = sadd.s32 0, 0
    %p37 = scmp.lt.s32.totalorder %s36, 0
    %s38 = scalar_select %p37, %s36, 0
    %s39 = smul.u32 2, %s38
    %p40 = scmp.lt.s32.totalorder %s39, 1
    %s41 = scalar_select %p40, %s39, 1
    %s42 = smul.addr %s41, 8
    %s43 = scalar_lea.vmem %s0, %s42
    %s44 = sadd.s32 0, 0
    %p45 = scmp.lt.s32.totalorder %s44, 0
    %s46 = scalar_select %p45, %s44, 0
    %s47 = smul.u32 2, %s46
    %p48 = scmp.lt.s32.totalorder %s47, 1
    %s49 = scalar_select %p48, %s47, 1
    %s50 = smul.addr %s49, 8
    %s51 = scalar_lea.vmem %s1, %s50
    %s52 = sadd.s32 0, 0
    %p53 = scmp.lt.s32.totalorder %s52, 0
    %s54 = scalar_select %p53, %s52, 0
    %s55 = smul.u32 2, %s54
    %p56 = scmp.lt.s32.totalorder %s55, 1
    %s57 = scalar_select %p56, %s55, 1
    %s58 = smul.addr %s57, 8
    %s59 = scalar_lea.vmem %s0, %s58
    %s60 = sadd.s32 0, 0
    %p61 = scmp.lt.s32.totalorder %s60, 0
    %s62 = scalar_select %p61, %s60, 0
    %s63 = smul.u32 2, %s62
    %s64 = sadd.s32 0, 0
    %p65 = scmp.lt.s32.totalorder %s64, 0
    %s66 = scalar_select %p65, %s64, 0
    %s67 = smul.u32 2, %s66
    %p68 = scmp.lt.s32.totalorder %s67, 1
    %s69 = scalar_select %p68, %s67, 1
    %s70 = smul.addr %s69, 8
    %s71 = scalar_lea.vmem %s1, %s70
    %s72 = sadd.s32 0, 0
    %p73 = scmp.lt.s32.totalorder %s72, 0
    %s74 = scalar_select %p73, %s72, 0
    %s75 = smul.u32 2, %s74
    %p76 = scmp.eq.s32.totalorder 0, 0
    // Predicated region
    $region10: #{tpu_custom_call.1} parent=1 // pred_check
      %p77 = pneg %p76
    $region11: #{tpu_custom_call.1} parent=1 // pred_check_branch
      %79 = sbr.rel (%p77) target = $region13
    $region12: #{tpu_custom_call.1} parent=1 // pred_region
      %vm80 = vcmask 0
      %81 = vst.msk [vmem:[#allocation2] sm:$0x1] %vm80, 0.0
    $region13: #{tpu_custom_call.1} parent=1 // pred_fallthru
      _
    %v82 = vld [vmem:[%s59] sm:$0xff]
    %v83 = vld [vmem:[%s59 + $0x8] sm:$0xff]
    %v84 = vld [vmem:[%s71] sm:$0xff]
    %v85 = vld [vmem:[%s71 + $0x8] sm:$0xff]
    %vm86 = vcmask 64512
    %v87 = vsel %vm86, %v82, -inf
    %88 = vmax.xlane.f32.xlu0 %v87
    %v89 = vpop.xlane.xlu0 %88
    %v90 = vsel %vm86, %v83, -inf
    %91 = vmax.xlane.f32.xlu0 %v90
    %v92 = vpop.xlane.xlu0 %91
    %v93 = vsub.f32 %v82, %v89
    %v94 = vsub.f32 %v83, %v92
    %v95 = vmul.f32 %v93, 1.442695
    %v96 = vpow.pop %v95
    %v97 = vmul.f32 %v94, 1.442695
    %v98 = vpow.pop %v97
    %v99 = vsel %vm86, %v96, 0.0
    %100 = vadd.xlane.f32.xlu0 %v99
    %v101 = vpop.xlane.xlu0 %100
    %v102 = vsel %vm86, %v98, 0.0
    %103 = vadd.xlane.f32.xlu0 %v102
    %v104 = vpop.xlane.xlu0 %103
    %v105 = vlog2.pop %v101
    %v106 = vmul.f32 %v105, 0.6931472
    %v107 = vlog2.pop %v104
    %v108 = vmul.f32 %v107, 0.6931472
    %v109 = vadd.f32 %v89, %v106
    %v110 = vadd.f32 %v92, %v108
    %v111 = vlaneseq
    %v112 = vand.u32 %v111, 127
    %113 = vset.pattern.permute.xlu0 0
    %114 = vperm.xlu0 %113, %v84
    %v115 = vpop.permute.xlu0 %114
    %116 = vset.pattern.permute.xlu0 0
    %117 = vperm.xlu0 %116, %v85
    %v118 = vpop.permute.xlu0 %117
    %vm119 = vcmp.eq.s32.totalorder %v112, %v115
    %vm120 = vcmp.eq.s32.totalorder %v112, %v118
    %v121 = vsel %vm119, %v82, 0.0
    %v122 = vsel %vm120, %v83, 0.0
    %v123 = vsel %vm86, %v121, 0.0
    %124 = vadd.xlane.f32.xlu0 %v123
    %v125 = vpop.xlane.xlu0 %124
    %v126 = vsel %vm86, %v122, 0.0
    %127 = vadd.xlane.f32.xlu0 %v126
    %v128 = vpop.xlane.xlu0 %127
    %v129 = vsub.f32 %v109, %v125
    %v130 = vsub.f32 %v110, %v128
    %v131 = vsub.f32 0.0, %v129
    %v132 = vsub.f32 0.0, %v130
    %v133 = vmul.f32 %v131, 1.442695
    %v134 = vpow.pop %v133
    %v135 = vmul.f32 %v132, 1.442695
    %v136 = vpow.pop %v135
    %v137 = vsub.f32 1.0, %v134
    %v138 = vsub.f32 1.0, %v136
    %v139 = vmul.f32 %v137, %v137
    %v140 = vmul.f32 %v138, %v138
    %v141 = vmul.f32 %v139, %v129
    %v142 = vmul.f32 %v140, %v130
    %s143 = sadd.s32 0, 0
    %v144 = vlaneseq
    %v145 = vshrl.u32 %v144, 7
    %v146 = vadd.s32 %v145, 8
    %s147 = smul.u32 %s143, 16
    %v148 = vstv %s147
    %v149 = vadd.s32 %v148, %v145
    %v150 = vadd.s32 %v148, %v146
    %vm151 = vcmp.lt.s32.totalorder %v149, 16
    %vm152 = vcmp.lt.s32.totalorder %v150, 16
    %v153 = vsel %vm151, %v141, 0.0
    %v154 = vsel %vm152, %v142, 0.0
    %v155 = vld [vmem:[#allocation2] sm:$0x1]
    %vm156 = vcmask 7168
    %v157 = vsel %vm156, %v153, 0.0
    %v158 = vsel %vm156, %v154, 0.0
    %v159 = vadd.f32 %v157, %v158
    %160 = vadd.xlane.f32.xlu0 %v159
    %v161 = vpop.xlane.xlu0 %160
    %v162 = vrot.slane %v161, 4
    %v163 = vadd.f32 %v161, %v162
    %v164 = vrot.slane %v163, 2
    %v165 = vadd.f32 %v163, %v164
    %v166 = vrot.slane %v165, 1
    %v167 = vadd.f32 %v165, %v166
    %s168 = vtos %v167
    %v169 = vstv %s168
    %v170 = vadd.f32 %v155, %v169
    %vm171 = vcmask 0
    %172 = vst.msk [vmem:[#allocation2] sm:$0x1] %vm171, %v170
    // Predicated region
    $region14: #{tpu_custom_call.1} parent=1 // pred_check
      _
    $region15: #{tpu_custom_call.1} parent=1 // pred_check_branch
      %174 = sbr.rel (0) target = $region17
    $region16: #{tpu_custom_call.1} parent=1 // pred_region
      %176 = vsyncadd [#allocation3], 0
      %s178 = sshll.u32 [#allocation2], 4
      %s179 = int_to_ptr.vmem [resolvable:$true] %s178
      %s180 = sshll.u32 %s2, 4
      %s181 = int_to_ptr.hbm [resolvable:$true] %s180
      %183 = dma.vmem_to_hbm [thread:$0]  %s179, 16, %s181, [#allocation3]
    $region17: #{tpu_custom_call.1} parent=1 // pred_fallthru
      _
    // Predicated region
    $region18: #{tpu_custom_call.1} parent=1 // pred_check
      _
    $region19: #{tpu_custom_call.1} parent=1 // pred_check_branch
      %185 = sbr.rel (0) target = $region21
    $region20: #{tpu_custom_call.1} parent=1 // pred_region
      %187 = dma.done [#allocation3], 16
    $region21: #{tpu_custom_call.1} parent=1 // pred_fallthru
      _
    %188 = vsyncpa [#allocation3], 1

</llo_original>
